<compile_context>
chip_gen: v6e
topology: v6e:2x2x1
jax: 0.10.0
libtpu: 0.0.40
codegen_flags: <defaults>
</compile_context>

<pallas_src>
import functools

import jax
import jax.numpy as jnp
from jax.experimental import pallas as pl
from jax.experimental.pallas import tpu as pltpu


def _build_prompt_kernel(tl_ref, patch_ref, prompt_ref, *, H, W, P, C):
    # tl_ref     : SMEM int32[2]    (top-left row r0, col c0)
    # patch_ref  : VMEM (C, P, P)   learnable patch parameter
    # prompt_ref : VMEM (C, H, W)   output: zeros with patch at [r0:r0+P, c0:c0+P]
    #
    # prompt[c] = R @ patch[c] @ S with one-hot placement matrices
    #   R[h, i] = (h == r0 + i)   (H, P)
    #   S[j, w] = (w == c0 + j)   (P, W)
    r0 = tl_ref[0]
    c0 = tl_ref[1]
    h_idx = jax.lax.broadcasted_iota(jnp.int32, (H, P), 0)
    i_idx = jax.lax.broadcasted_iota(jnp.int32, (H, P), 1)
    rows = (h_idx == i_idx + r0).astype(jnp.float32)            # (H, P)
    j_idx = jax.lax.broadcasted_iota(jnp.int32, (P, W), 0)
    w_idx = jax.lax.broadcasted_iota(jnp.int32, (P, W), 1)
    cols = (w_idx == j_idx + c0).astype(jnp.float32)            # (P, W)
    for c in range(C):                                          # C == 3, one-time cost
        placed = jnp.dot(
            jnp.dot(rows, patch_ref[c].astype(jnp.float32),
                    preferred_element_type=jnp.float32),
            cols, preferred_element_type=jnp.float32)           # (H, W)
        # TODO(synk): prompt is materialized/added in x.dtype; PyTorch would
        # promote a bf16 x to f32 when adding the f32 parameter.
        prompt_ref[c] = placed.astype(prompt_ref.dtype)


def _add_prompt_kernel(x_ref, prompt_ref, o_ref):
    # x_ref/o_ref: (Bt, Nt)   prompt_ref: (1, Nt)  -> pure load-add-store.
    o_ref[...] = x_ref[...] + prompt_ref[...]


def _pick_tiles(B, N, itemsize, *, budget_bytes=4 << 20):
    """Choose (Bt, Nt) tiles for the (B, N) streaming add.

    Every block dim is either a multiple of the sublane/lane alignment or the
    full array dim, so the (8,128) BlockSpec rule always holds; the grid uses
    cdiv and Pallas masks partial blocks.  Blocks target ~budget_bytes.
    """
    sub = max(8, 32 // itemsize)        # sublane pack: 8 f32, 16 bf16, 32 int8

    if sub * N * itemsize <= budget_bytes:
        Nt = N                           # full lane extent fits a sub-row stripe
    else:
        # Tile the lane axis in multiples of 128 so Bt can stay >= sub.
        Nt = max(128, (budget_bytes // (sub * itemsize)) // 128 * 128)
        Nt = min(Nt, pl.cdiv(N, 128) * 128)

    Bt = max(sub, (budget_bytes // (Nt * itemsize)) // sub * sub)
    if Bt >= B:
        Bt = B                           # full batch dim (always legal)

    # v7x megacore: keep >= 2 grid steps so both TensorCores get work.
    if pl.cdiv(B, Bt) * pl.cdiv(N, Nt) < 2:
        if Bt >= 2 * sub:
            Bt = pl.cdiv(pl.cdiv(B, 2), sub) * sub
        elif Nt >= 256:
            Nt = pl.cdiv(pl.cdiv(N, 2), 128) * 128
    return Bt, Nt


def random_patch_prompter(x_nchw, patch_param, top_left, *, donate_x=False):
    """x_nchw: (B, 3, H, W); patch_param: (1, 3, P, P); top_left: (2,) int32."""
    B, C, H, W = x_nchw.shape
    P = patch_param.shape[-1]
    N = C * H * W
    dtype = x_nchw.dtype
    itemsize = jnp.dtype(dtype).itemsize

    # ---- Build the batch-invariant prompt once (hoisted out of the loop) ----
    prompt = pl.pallas_call(
        functools.partial(_build_prompt_kernel, H=H, W=W, P=P, C=C),
        out_shape=jax.ShapeDtypeStruct((C, H, W), dtype),
        in_specs=[
            pl.BlockSpec(memory_space=pltpu.MemorySpace.SMEM),   # top_left scalars
            pl.BlockSpec(memory_space=pltpu.MemorySpace.VMEM),   # patch
        ],
        out_specs=pl.BlockSpec(memory_space=pltpu.MemorySpace.VMEM),
    )(top_left.astype(jnp.int32), patch_param[0])

    # ---- Streaming add in a lane-dense flattened layout (free reshapes) -----
    x_flat = x_nchw.reshape(B, N)
    prompt_flat = prompt.reshape(1, N)
    Bt, Nt = _pick_tiles(B, N, itemsize)

    # Scoped-VMEM limit from the real footprint: double-buffered x-in + out +
    # prompt blocks, plus headroom.  (v5e default is only 16 MiB.)
    needed = (2 * Bt * Nt + 2 * Bt * Nt + 2 * Nt) * itemsize + (4 << 20)
    vmem_limit = int(min(48 << 20, max(16 << 20, needed)))

    out_flat = pl.pallas_call(
        _add_prompt_kernel,
        out_shape=jax.ShapeDtypeStruct((B, N), dtype),
        grid=(pl.cdiv(B, Bt), pl.cdiv(N, Nt)),
        in_specs=[
            pl.BlockSpec((Bt, Nt), lambda b, n: (b, n)),
            pl.BlockSpec((1, Nt), lambda b, n: (0, n)),   # broadcast over batch
        ],
        out_specs=pl.BlockSpec((Bt, Nt), lambda b, n: (b, n)),
        compiler_params=pltpu.CompilerParams(
            dimension_semantics=("parallel", "parallel"),
            vmem_limit_bytes=vmem_limit,
        ),
        input_output_aliases=({0: 0} if donate_x else {}),
    )(x_flat, prompt_flat)

    return out_flat.reshape(B, C, H, W)


if __name__ == "__main__":
    key = jax.random.PRNGKey(0)
    k_patch, k_x, k_tl = jax.random.split(key, 3)

    image_size, prompt_size, B = 16, 4, 2

    # nn.Parameter(torch.randn(1, 3, prompt_size, prompt_size)) — deterministic init.
    patch_param = jax.random.normal(
        k_patch, (1, 3, prompt_size, prompt_size), jnp.float32)
    x = jax.random.normal(k_x, (B, 3, image_size, image_size), jnp.float32)

    # torch.randint(0, image_size - 1, (2,)), clamped so the patch fits fully.
    # TODO(synk): PyTorch errors if top_left + prompt_size > image_size; this
    # kernel instead clips the patch at the image border, so treat in-range
    # top_left as a precondition of the wrapper.
    top_left = jax.random.randint(k_tl, (2,), 0, image_size - 1, jnp.int32)
    top_left = jnp.minimum(top_left, image_size - prompt_size)

    out = jax.jit(random_patch_prompter)(x, patch_param, top_left)
    out = jax.block_until_ready(out)

    # Pure-JAX reference check.
    prompt = jnp.zeros((1, 3, image_size, image_size), jnp.float32)
    prompt = jax.lax.dynamic_update_slice(
        prompt, patch_param, (0, 0, int(top_left[0]), int(top_left[1])))
    ref = x + prompt
    assert out.shape == x.shape and out.dtype == x.dtype
    assert jnp.allclose(out, ref, atol=1e-6), float(jnp.abs(out - ref).max())

    print("KERNEL_OK")
</pallas_src>

<mosaic_0001>
module attributes {stable_mosaic.version = 11 : i64} {
  func.func @_build_prompt_kernel(%arg0: memref<2xi32, #tpu.memory_space<smem>>, %arg1: memref<3x4x4xf32, #tpu.memory_space<vmem>>, %arg2: memref<3x16x16xf32, #tpu.memory_space<vmem>>) attributes {dimension_semantics = [], scalar_prefetch = 0 : i64, scratch_operands = 0 : i64, tpu.core_type = #tpu.core_type<tc>} {
    %c0 = arith.constant 0 : index
    %0 = memref.load %arg0[%c0] : memref<2xi32, #tpu.memory_space<smem>>
    %c1 = arith.constant 1 : index
    %1 = memref.load %arg0[%c1] : memref<2xi32, #tpu.memory_space<smem>>
    %2 = tpu.iota {dimensions = array<i32: 0>} : vector<16x4xi32>
    %3 = tpu.iota {dimensions = array<i32: 1>} : vector<16x4xi32>
    %4 = vector.broadcast %0 : i32 to vector<16x4xi32>
    %5 = arith.addi %3, %4 : vector<16x4xi32>
    %6 = arith.cmpi eq, %2, %5 : vector<16x4xi32>
    %7 = arith.extui %6 : vector<16x4xi1> to vector<16x4xi32>
    %8 = arith.sitofp %7 : vector<16x4xi32> to vector<16x4xf32>
    %9 = tpu.iota {dimensions = array<i32: 0>} : vector<4x16xi32>
    %10 = tpu.iota {dimensions = array<i32: 1>} : vector<4x16xi32>
    %11 = vector.broadcast %1 : i32 to vector<4x16xi32>
    %12 = arith.addi %9, %11 : vector<4x16xi32>
    %13 = arith.cmpi eq, %10, %12 : vector<4x16xi32>
    %14 = arith.extui %13 : vector<4x16xi1> to vector<4x16xi32>
    %15 = arith.sitofp %14 : vector<4x16xi32> to vector<4x16xf32>
    %c0_0 = arith.constant 0 : index
    %c0_1 = arith.constant 0 : index
    %c0_2 = arith.constant 0 : index
    %16 = vector.load %arg1[%c0_0, %c0_1, %c0_2] : memref<3x4x4xf32, #tpu.memory_space<vmem>>, vector<1x4x4xf32>
    %17 = vector.shape_cast %16 : vector<1x4x4xf32> to vector<4x4xf32>
    %cst = arith.constant dense<0.000000e+00> : vector<16x4xf32>
    %18 = tpu.matmul %8, %17, %cst {dimension_numbers = #tpu.dot_dimension_numbers<[1], [0], [0], [1], [0, 0, 1, 1], [], []>} : vector<16x4xf32>, vector<4x4xf32>, vector<16x4xf32> -> vector<16x4xf32>
    %cst_3 = arith.constant dense<0.000000e+00> : vector<16x16xf32>
    %19 = tpu.matmul %18, %15, %cst_3 {dimension_numbers = #tpu.dot_dimension_numbers<[1], [0], [0], [1], [0, 0, 1, 1], [], []>} : vector<16x4xf32>, vector<4x16xf32>, vector<16x16xf32> -> vector<16x16xf32>
    %c0_4 = arith.constant 0 : index
    %c0_5 = arith.constant 0 : index
    %c0_6 = arith.constant 0 : index
    %20 = vector.load %arg2[%c0_4, %c0_5, %c0_6] : memref<3x16x16xf32, #tpu.memory_space<vmem>>, vector<1x16x16xf32>
    %21 = vector.shape_cast %20 : vector<1x16x16xf32> to vector<16x16xf32>
    %22 = vector.shape_cast %19 : vector<16x16xf32> to vector<1x16x16xf32>
    tpu.vector_store %arg2[%c0_4, %c0_5, %c0_6], %22 {strides = array<i32>} : memref<3x16x16xf32, #tpu.memory_space<vmem>>, vector<1x16x16xf32>,
    %c1_7 = arith.constant 1 : index
    %c0_8 = arith.constant 0 : index
    %c0_9 = arith.constant 0 : index
    %23 = vector.load %arg1[%c1_7, %c0_8, %c0_9] : memref<3x4x4xf32, #tpu.memory_space<vmem>>, vector<1x4x4xf32>
    %24 = vector.shape_cast %23 : vector<1x4x4xf32> to vector<4x4xf32>
    %cst_10 = arith.constant dense<0.000000e+00> : vector<16x4xf32>
    %25 = tpu.matmul %8, %24, %cst_10 {dimension_numbers = #tpu.dot_dimension_numbers<[1], [0], [0], [1], [0, 0, 1, 1], [], []>} : vector<16x4xf32>, vector<4x4xf32>, vector<16x4xf32> -> vector<16x4xf32>
    %cst_11 = arith.constant dense<0.000000e+00> : vector<16x16xf32>
    %26 = tpu.matmul %25, %15, %cst_11 {dimension_numbers = #tpu.dot_dimension_numbers<[1], [0], [0], [1], [0, 0, 1, 1], [], []>} : vector<16x4xf32>, vector<4x16xf32>, vector<16x16xf32> -> vector<16x16xf32>
    %c1_12 = arith.constant 1 : index
    %c0_13 = arith.constant 0 : index
    %c0_14 = arith.constant 0 : index
    %27 = vector.load %arg2[%c1_12, %c0_13, %c0_14] : memref<3x16x16xf32, #tpu.memory_space<vmem>>, vector<1x16x16xf32>
    %28 = vector.shape_cast %27 : vector<1x16x16xf32> to vector<16x16xf32>
    %29 = vector.shape_cast %26 : vector<16x16xf32> to vector<1x16x16xf32>
    tpu.vector_store %arg2[%c1_12, %c0_13, %c0_14], %29 {strides = array<i32>} : memref<3x16x16xf32, #tpu.memory_space<vmem>>, vector<1x16x16xf32>,
    %c2 = arith.constant 2 : index
    %c0_15 = arith.constant 0 : index
    %c0_16 = arith.constant 0 : index
    %30 = vector.load %arg1[%c2, %c0_15, %c0_16] : memref<3x4x4xf32, #tpu.memory_space<vmem>>, vector<1x4x4xf32>
    %31 = vector.shape_cast %30 : vector<1x4x4xf32> to vector<4x4xf32>
    %cst_17 = arith.constant dense<0.000000e+00> : vector<16x4xf32>
    %32 = tpu.matmul %8, %31, %cst_17 {dimension_numbers = #tpu.dot_dimension_numbers<[1], [0], [0], [1], [0, 0, 1, 1], [], []>} : vector<16x4xf32>, vector<4x4xf32>, vector<16x4xf32> -> vector<16x4xf32>
    %cst_18 = arith.constant dense<0.000000e+00> : vector<16x16xf32>
    %33 = tpu.matmul %32, %15, %cst_18 {dimension_numbers = #tpu.dot_dimension_numbers<[1], [0], [0], [1], [0, 0, 1, 1], [], []>} : vector<16x4xf32>, vector<4x16xf32>, vector<16x16xf32> -> vector<16x16xf32>
    %c2_19 = arith.constant 2 : index
    %c0_20 = arith.constant 0 : index
    %c0_21 = arith.constant 0 : index
    %34 = vector.load %arg2[%c2_19, %c0_20, %c0_21] : memref<3x16x16xf32, #tpu.memory_space<vmem>>, vector<1x16x16xf32>
    %35 = vector.shape_cast %34 : vector<1x16x16xf32> to vector<16x16xf32>
    %36 = vector.shape_cast %33 : vector<16x16xf32> to vector<1x16x16xf32>
    tpu.vector_store %arg2[%c2_19, %c0_20, %c0_21], %36 {strides = array<i32>} : memref<3x16x16xf32, #tpu.memory_space<vmem>>, vector<1x16x16xf32>,
    return
  }
}

module attributes {stable_mosaic.version = 11 : i64} {
  func.func @_add_prompt_kernel(%arg0: i32, %arg1: i32, %arg2: memref<2x384xf32, #tpu.memory_space<vmem>>, %arg3: memref<1x384xf32, #tpu.memory_space<vmem>>, %arg4: memref<2x384xf32, #tpu.memory_space<vmem>>) attributes {dimension_semantics = [#tpu.dimension_semantics<parallel>, #tpu.dimension_semantics<parallel>], iteration_bounds = array<i64: 1, 2>, scalar_prefetch = 0 : i64, scratch_operands = 0 : i64, tpu.core_type = #tpu.core_type<tc>, window_params = [{transform_indices = @transform_0, window_bounds = array<i64: 2, 384>}, {transform_indices = @transform_1, window_bounds = array<i64: 1, 384>}, {transform_indices = @transform_2, window_bounds = array<i64: 2, 384>}]} {
    %c0 = arith.constant 0 : index
    %c0_0 = arith.constant 0 : index
    %0 = vector.load %arg2[%c0, %c0_0] : memref<2x384xf32, #tpu.memory_space<vmem>>, vector<2x384xf32>
    %c0_1 = arith.constant 0 : index
    %c0_2 = arith.constant 0 : index
    %1 = vector.load %arg3[%c0_1, %c0_2] : memref<1x384xf32, #tpu.memory_space<vmem>>, vector<1x384xf32>
    %2 = vector.broadcast %1 : vector<1x384xf32> to vector<2x384xf32>
    %3 = arith.addf %0, %2 : vector<2x384xf32>
    %c0_3 = arith.constant 0 : index
    %c0_4 = arith.constant 0 : index
    %4 = vector.load %arg4[%c0_3, %c0_4] : memref<2x384xf32, #tpu.memory_space<vmem>>, vector<2x384xf32>
    tpu.vector_store %arg4[%c0_3, %c0_4], %3 {strides = array<i32>} : memref<2x384xf32, #tpu.memory_space<vmem>>, vector<2x384xf32>,
    return
  }
  func.func @transform_0(%arg0: i32, %arg1: i32) -> (i32, i32) {
    %c0_i32 = arith.constant 0 : i32
    return %arg0, %arg1 : i32, i32
  }
  func.func @transform_1(%arg0: i32, %arg1: i32) -> (i32, i32) {
    %c0_i32 = arith.constant 0 : i32
    %c0_i32_0 = arith.constant 0 : i32
    return %c0_i32, %arg1 : i32, i32
  }
  func.func @transform_2(%arg0: i32, %arg1: i32) -> (i32, i32) {
    %c0_i32 = arith.constant 0 : i32
    return %arg0, %arg1 : i32, i32
  }
}

</mosaic_0001>

<llo_original>
// kernel: random_patch_prompter.2
$region0: #{random_patch_prompter.2}
  #allocation0 [shape = 'u32[]', space=smem, size = 0x4, offset = 0x4, fixed_abs, tag = 'smem constant byte address 0x4 - core index']
  #allocation1 [shape = 'u32[144,128]{1,0:T(1,128)}', space=vmem, size = 0x12000, scoped, tag = 'internal scratch']
  %s0 = inlined_call_operand.vmem [shape: s32[2], index: 0, kind: input, shape index: {}]
  %s1 = inlined_call_operand.vmem [shape: f32[3,4,4], index: 1, kind: input, shape index: {}]
  %s2 = inlined_call_operand.vmem [shape: f32[3,16,16], index: 2, kind: output, shape index: {}]
  %s3 = sld [smem:[#allocation0]]
  $region22: #{random_patch_prompter.2} parent=0
    _
  %s5 = ssub.s32 1, %s3
  %s6 = scalar_select 0, %s5, %s3
  $region1: #{random_patch_prompter.2} parent=0
    #allocation2 [shape = 'u8[512]{0}', space=smem, size = 0x200, scoped, tag = 'input window, operand 0, single buffered']
    #allocation3 [shape = 's32[1]{0}', space=sflag, size = 0x4, scoped, tag = 'scoped memory for random_patch_prompter.2']
    %7 = vsyncpa [#allocation3], 0
    // Predicated region
    $region2: #{random_patch_prompter.2} parent=1 // pred_check
      _
    $region3: #{random_patch_prompter.2} parent=1 // pred_check_branch
      %9 = sbr.rel (0) target = $region5
    $region4: #{random_patch_prompter.2} parent=1 // pred_region
      %s11 = ssub.s32 16, 16
      %12 = vsyncadd [#allocation3], %s11
      %s14 = sshll.u32 %s0, 4
      %s15 = int_to_ptr.vmem [resolvable:$true] %s14
      %17 = dma.vmem_to_smem %s15, 16, [#allocation2], [#allocation3]
    $region5: #{random_patch_prompter.2} parent=1 // pred_fallthru
      _
    // Predicated region
    $region6: #{random_patch_prompter.2} parent=1 // pred_check
      _
    $region7: #{random_patch_prompter.2} parent=1 // pred_check_branch
      %19 = sbr.rel (0) target = $region9
    $region8: #{random_patch_prompter.2} parent=1 // pred_region
      _
    $region9: #{random_patch_prompter.2} parent=1 // pred_fallthru
      _
    // Predicated region
    $region10: #{random_patch_prompter.2} parent=1 // pred_check
      _
    $region11: #{random_patch_prompter.2} parent=1 // pred_check_branch
      %21 = sbr.rel (0) target = $region13
    $region12: #{random_patch_prompter.2} parent=1 // pred_region
      %22 = dma.done [#allocation3], 16
    $region13: #{random_patch_prompter.2} parent=1 // pred_fallthru
      _
    %23 = sfence
    %s24 = sld [smem:[#allocation2]]
    %s25 = sld [smem:[#allocation2 + $0x1]]
    %v26 = vlaneseq
    %v27 = vshrl.u32 %v26, 7
    %v28 = vadd.s32 %v27, 8
    %v29 = vlaneseq
    %v30 = vand.u32 %v29, 127
    %v31 = vstv %s24
    %v32 = vadd.s32 %v30, %v31
    %vm33 = vcmp.eq.s32.totalorder %v27, %v32
    %vm34 = vcmp.eq.s32.totalorder %v28, %v32
    %v35 = vsel %vm33, 1, 0
    %v36 = vsel %vm34, 1, 0
    %v37 = vcvt.s32.f32 %v35
    %v38 = vcvt.s32.f32 %v36
    %v39 = vstv %s25
    %v40 = vadd.s32 %v27, %v39
    %vm41 = vcmp.eq.s32.totalorder %v30, %v40
    %v42 = vsel %vm41, 1, 0
    %v43 = vcvt.s32.f32 %v42
    %v44 = vld [vmem:[%s1] sm:$0xf]
    %vm45 = vcmask 31744
    %v47 = vsel %vm45, %v37, 0
    %v50 = vsel %vm45, %v38, 0
    %vm52 = vcmask 1043456
    %v54 = vsel %vm52, %v44, 0
    %56 = vmatprep.subr.mxu0 0.0
    %57 = vmatpush1.msra.mxu0 0.0
    %58 = vmatprep.subr.mxu0 0.0
    %59 = vmatpush1.msra.mxu0 0.0
    %60 = vmatprep.subr.mxu0 0.0
    %61 = vmatpush1.msra.mxu0 0.0
    %62 = vmatprep.subr.mxu0 0.0
    %63 = vmatpush1.msra.mxu0 0.0
    %64 = vmatprep.subr.mxu0 0.0
    %65 = vmatpush1.msra.mxu0 0.0
    %66 = vmatprep.subr.mxu0 0.0
    %67 = vmatpush1.msra.mxu0 0.0
    %68 = vmatprep.subr.mxu0 0.0
    %69 = vmatpush1.msra.mxu0 0.0
    %70 = vmatprep.subr.mxu0 0.0
    %71 = vmatpush1.msra.mxu0 0.0
    %72 = vmatprep.subr.mxu0 0.0
    %73 = vmatpush1.msra.mxu0 0.0
    %74 = vmatprep.subr.mxu0 0.0
    %75 = vmatpush1.msra.mxu0 0.0
    %76 = vmatprep.subr.mxu0 0.0
    %77 = vmatpush1.msra.mxu0 0.0
    %78 = vmatprep.subr.mxu0 0.0
    %79 = vmatpush1.msra.mxu0 0.0
    %80 = vmatprep.subr.mxu0 0.0
    %81 = vmatpush1.msra.mxu0 0.0
    %82 = vmatprep.subr.mxu0 0.0
    %83 = vmatpush1.msra.mxu0 0.0
    %84 = vmatprep.subr.mxu0 0.0
    %85 = vmatpush1.msra.mxu0 0.0
    %86 = vmatprep.subr.mxu0 0.0
    %87 = vmatpush1.msra.mxu0 %v54
    %88 = vmatprep.subr.mxu0 0.0
    %89 = vmatpush2.msra.mxu0 0.0
    %90 = vmatprep.subr.mxu0 0.0
    %91 = vmatpush2.msra.mxu0 0.0
    %92 = vmatprep.subr.mxu0 0.0
    %93 = vmatpush2.msra.mxu0 0.0
    %94 = vmatprep.subr.mxu0 0.0
    %95 = vmatpush2.msra.mxu0 0.0
    %96 = vmatprep.subr.mxu0 0.0
    %97 = vmatpush2.msra.mxu0 0.0
    %98 = vmatprep.subr.mxu0 0.0
    %99 = vmatpush2.msra.mxu0 0.0
    %100 = vmatprep.subr.mxu0 0.0
    %101 = vmatpush2.msra.mxu0 0.0
    %102 = vmatprep.subr.mxu0 0.0
    %103 = vmatpush2.msra.mxu0 0.0
    %104 = vmatprep.subr.mxu0 0.0
    %105 = vmatpush2.msra.mxu0 0.0
    %106 = vmatprep.subr.mxu0 0.0
    %107 = vmatpush2.msra.mxu0 0.0
    %108 = vmatprep.subr.mxu0 0.0
    %109 = vmatpush2.msra.mxu0 0.0
    %110 = vmatprep.subr.mxu0 0.0
    %111 = vmatpush2.msra.mxu0 0.0
    %112 = vmatprep.subr.mxu0 0.0
    %113 = vmatpush2.msra.mxu0 0.0
    %114 = vmatprep.subr.mxu0 0.0
    %115 = vmatpush2.msra.mxu0 0.0
    %116 = vmatprep.subr.mxu0 0.0
    %117 = vmatpush2.msra.mxu0 0.0
    %118 = vmatprep.subr.mxu0 0.0
    %119 = vmatpush2.msra.mxu0 0.0
    %120 = vmatprep.mubr.f32.mxu0 0.0
    %121 = vmatmul.mubr.f32.gmra.mxu0 %v47
    %v122 = vpop.f32.mrf.mxu0
    %v123 = vadd.f32 0.0, %v122
    %v124 = vpop.f32.mrf.mxu0
    %125 = vmatprep.mubr.f32.mxu0 0.0
    %126 = vmatmul.mubr.f32.gmra.mxu0 %v50
    %v127 = vpop.f32.mrf.mxu0
    %v128 = vadd.f32 0.0, %v127
    %v129 = vpop.f32.mrf.mxu0
    %130 = vdwg.mxu0
    %v132 = vsel %vm45, %v123, 0
    %v135 = vsel %vm45, %v128, 0
    %v138 = vsel %vm52, %v43, 0
    %140 = vmatprep.subr.mxu0 0.0
    %141 = vmatpush1.msra.mxu0 0.0
    %142 = vmatprep.subr.mxu0 0.0
    %143 = vmatpush1.msra.mxu0 0.0
    %144 = vmatprep.subr.mxu0 0.0
    %145 = vmatpush1.msra.mxu0 0.0
    %146 = vmatprep.subr.mxu0 0.0
    %147 = vmatpush1.msra.mxu0 0.0
    %148 = vmatprep.subr.mxu0 0.0
    %149 = vmatpush1.msra.mxu0 0.0
    %150 = vmatprep.subr.mxu0 0.0
    %151 = vmatpush1.msra.mxu0 0.0
    %152 = vmatprep.subr.mxu0 0.0
    %153 = vmatpush1.msra.mxu0 0.0
    %154 = vmatprep.subr.mxu0 0.0
    %155 = vmatpush1.msra.mxu0 0.0
    %156 = vmatprep.subr.mxu0 0.0
    %157 = vmatpush1.msra.mxu0 0.0
    %158 = vmatprep.subr.mxu0 0.0
    %159 = vmatpush1.msra.mxu0 0.0
    %160 = vmatprep.subr.mxu0 0.0
    %161 = vmatpush1.msra.mxu0 0.0
    %162 = vmatprep.subr.mxu0 0.0
    %163 = vmatpush1.msra.mxu0 0.0
    %164 = vmatprep.subr.mxu0 0.0
    %165 = vmatpush1.msra.mxu0 0.0
    %166 = vmatprep.subr.mxu0 0.0
    %167 = vmatpush1.msra.mxu0 0.0
    %168 = vmatprep.subr.mxu0 0.0
    %169 = vmatpush1.msra.mxu0 0.0
    %170 = vmatprep.subr.mxu0 0.0
    %171 = vmatpush1.msra.mxu0 %v138
    %172 = vmatprep.subr.mxu0 0.0
    %173 = vmatpush2.msra.mxu0 0.0
    %174 = vmatprep.subr.mxu0 0.0
    %175 = vmatpush2.msra.mxu0 0.0
    %176 = vmatprep.subr.mxu0 0.0
    %177 = vmatpush2.msra.mxu0 0.0
    %178 = vmatprep.subr.mxu0 0.0
    %179 = vmatpush2.msra.mxu0 0.0
    %180 = vmatprep.subr.mxu0 0.0
    %181 = vmatpush2.msra.mxu0 0.0
    %182 = vmatprep.subr.mxu0 0.0
    %183 = vmatpush2.msra.mxu0 0.0
    %184 = vmatprep.subr.mxu0 0.0
    %185 = vmatpush2.msra.mxu0 0.0
    %186 = vmatprep.subr.mxu0 0.0
    %187 = vmatpush2.msra.mxu0 0.0
    %188 = vmatprep.subr.mxu0 0.0
    %189 = vmatpush2.msra.mxu0 0.0
    %190 = vmatprep.subr.mxu0 0.0
    %191 = vmatpush2.msra.mxu0 0.0
    %192 = vmatprep.subr.mxu0 0.0
    %193 = vmatpush2.msra.mxu0 0.0
    %194 = vmatprep.subr.mxu0 0.0
    %195 = vmatpush2.msra.mxu0 0.0
    %196 = vmatprep.subr.mxu0 0.0
    %197 = vmatpush2.msra.mxu0 0.0
    %198 = vmatprep.subr.mxu0 0.0
    %199 = vmatpush2.msra.mxu0 0.0
    %200 = vmatprep.subr.mxu0 0.0
    %201 = vmatpush2.msra.mxu0 0.0
    %202 = vmatprep.subr.mxu0 0.0
    %203 = vmatpush2.msra.mxu0 0.0
    %204 = vmatprep.mubr.f32.mxu0 0.0
    %205 = vmatmul.mubr.f32.gmra.mxu0 %v132
    %v206 = vpop.f32.mrf.mxu0
    %v207 = vadd.f32 0.0, %v206
    %v208 = vpop.f32.mrf.mxu0
    %209 = vmatprep.mubr.f32.mxu0 0.0
    %210 = vmatmul.mubr.f32.gmra.mxu0 %v135
    %v211 = vpop.f32.mrf.mxu0
    %v212 = vadd.f32 0.0, %v211
    %v213 = vpop.f32.mrf.mxu0
    %214 = vdwg.mxu0
    %vm215 = vcmask 130048
    %216 = vst.msk [vmem:[%s2] sm:$0xff] %vm215, %v207
    %217 = vst.msk [vmem:[%s2 + $0x8] sm:$0xff] %vm215, %v212
    %s218 = scalar_lea.vmem %s1, 4
    %v219 = vld [vmem:[%s218] sm:$0xf]
    %v221 = vsel %vm52, %v219, 0
    %223 = vmatprep.subr.mxu0 0.0
    %224 = vmatpush1.msra.mxu0 0.0
    %225 = vmatprep.subr.mxu0 0.0
    %226 = vmatpush1.msra.mxu0 0.0
    %227 = vmatprep.subr.mxu0 0.0
    %228 = vmatpush1.msra.mxu0 0.0
    %229 = vmatprep.subr.mxu0 0.0
    %230 = vmatpush1.msra.mxu0 0.0
    %231 = vmatprep.subr.mxu0 0.0
    %232 = vmatpush1.msra.mxu0 0.0
    %233 = vmatprep.subr.mxu0 0.0
    %234 = vmatpush1.msra.mxu0 0.0
    %235 = vmatprep.subr.mxu0 0.0
    %236 = vmatpush1.msra.mxu0 0.0
    %237 = vmatprep.subr.mxu0 0.0
    %238 = vmatpush1.msra.mxu0 0.0
    %239 = vmatprep.subr.mxu0 0.0
    %240 = vmatpush1.msra.mxu0 0.0
    %241 = vmatprep.subr.mxu0 0.0
    %242 = vmatpush1.msra.mxu0 0.0
    %243 = vmatprep.subr.mxu0 0.0
    %244 = vmatpush1.msra.mxu0 0.0
    %245 = vmatprep.subr.mxu0 0.0
    %246 = vmatpush1.msra.mxu0 0.0
    %247 = vmatprep.subr.mxu0 0.0
    %248 = vmatpush1.msra.mxu0 0.0
    %249 = vmatprep.subr.mxu0 0.0
    %250 = vmatpush1.msra.mxu0 0.0
    %251 = vmatprep.subr.mxu0 0.0
    %252 = vmatpush1.msra.mxu0 0.0
    %253 = vmatprep.subr.mxu0 0.0
    %254 = vmatpush1.msra.mxu0 %v221
    %255 = vmatprep.subr.mxu0 0.0
    %256 = vmatpush2.msra.mxu0 0.0
    %257 = vmatprep.subr.mxu0 0.0
    %258 = vmatpush2.msra.mxu0 0.0
    %259 = vmatprep.subr.mxu0 0.0
    %260 = vmatpush2.msra.mxu0 0.0
    %261 = vmatprep.subr.mxu0 0.0
    %262 = vmatpush2.msra.mxu0 0.0
    %263 = vmatprep.subr.mxu0 0.0
    %264 = vmatpush2.msra.mxu0 0.0
    %265 = vmatprep.subr.mxu0 0.0
    %266 = vmatpush2.msra.mxu0 0.0
    %267 = vmatprep.subr.mxu0 0.0
    %268 = vmatpush2.msra.mxu0 0.0
    %269 = vmatprep.subr.mxu0 0.0
    %270 = vmatpush2.msra.mxu0 0.0
    %271 = vmatprep.subr.mxu0 0.0
    %272 = vmatpush2.msra.mxu0 0.0
    %273 = vmatprep.subr.mxu0 0.0
    %274 = vmatpush2.msra.mxu0 0.0
    %275 = vmatprep.subr.mxu0 0.0
    %276 = vmatpush2.msra.mxu0 0.0
    %277 = vmatprep.subr.mxu0 0.0
    %278 = vmatpush2.msra.mxu0 0.0
    %279 = vmatprep.subr.mxu0 0.0
    %280 = vmatpush2.msra.mxu0 0.0
    %281 = vmatprep.subr.mxu0 0.0
    %282 = vmatpush2.msra.mxu0 0.0
    %283 = vmatprep.subr.mxu0 0.0
    %284 = vmatpush2.msra.mxu0 0.0
    %285 = vmatprep.subr.mxu0 0.0
    %286 = vmatpush2.msra.mxu0 0.0
    %287 = vmatprep.mubr.f32.mxu0 0.0
    %288 = vmatmul.mubr.f32.gmra.mxu0 %v47
    %v289 = vpop.f32.mrf.mxu0
    %v290 = vadd.f32 0.0, %v289
    %v291 = vpop.f32.mrf.mxu0
    %292 = vmatprep.mubr.f32.mxu0 0.0
    %293 = vmatmul.mubr.f32.gmra.mxu0 %v50
    %v294 = vpop.f32.mrf.mxu0
    %v295 = vadd.f32 0.0, %v294
    %v296 = vpop.f32.mrf.mxu0
    %297 = vdwg.mxu0
    %v299 = vsel %vm45, %v290, 0
    %v302 = vsel %vm45, %v295, 0
    %304 = vmatprep.subr.mxu0 0.0
    %305 = vmatpush1.msra.mxu0 0.0
    %306 = vmatprep.subr.mxu0 0.0
    %307 = vmatpush1.msra.mxu0 0.0
    %308 = vmatprep.subr.mxu0 0.0
    %309 = vmatpush1.msra.mxu0 0.0
    %310 = vmatprep.subr.mxu0 0.0
    %311 = vmatpush1.msra.mxu0 0.0
    %312 = vmatprep.subr.mxu0 0.0
    %313 = vmatpush1.msra.mxu0 0.0
    %314 = vmatprep.subr.mxu0 0.0
    %315 = vmatpush1.msra.mxu0 0.0
    %316 = vmatprep.subr.mxu0 0.0
    %317 = vmatpush1.msra.mxu0 0.0
    %318 = vmatprep.subr.mxu0 0.0
    %319 = vmatpush1.msra.mxu0 0.0
    %320 = vmatprep.subr.mxu0 0.0
    %321 = vmatpush1.msra.mxu0 0.0
    %322 = vmatprep.subr.mxu0 0.0
    %323 = vmatpush1.msra.mxu0 0.0
    %324 = vmatprep.subr.mxu0 0.0
    %325 = vmatpush1.msra.mxu0 0.0
    %326 = vmatprep.subr.mxu0 0.0
    %327 = vmatpush1.msra.mxu0 0.0
    %328 = vmatprep.subr.mxu0 0.0
    %329 = vmatpush1.msra.mxu0 0.0
    %330 = vmatprep.subr.mxu0 0.0
    %331 = vmatpush1.msra.mxu0 0.0
    %332 = vmatprep.subr.mxu0 0.0
    %333 = vmatpush1.msra.mxu0 0.0
    %334 = vmatprep.subr.mxu0 0.0
    %335 = vmatpush1.msra.mxu0 %v138
    %336 = vmatprep.subr.mxu0 0.0
    %337 = vmatpush2.msra.mxu0 0.0
    %338 = vmatprep.subr.mxu0 0.0
    %339 = vmatpush2.msra.mxu0 0.0
    %340 = vmatprep.subr.mxu0 0.0
    %341 = vmatpush2.msra.mxu0 0.0
    %342 = vmatprep.subr.mxu0 0.0
    %343 = vmatpush2.msra.mxu0 0.0
    %344 = vmatprep.subr.mxu0 0.0
    %345 = vmatpush2.msra.mxu0 0.0
    %346 = vmatprep.subr.mxu0 0.0
    %347 = vmatpush2.msra.mxu0 0.0
    %348 = vmatprep.subr.mxu0 0.0
    %349 = vmatpush2.msra.mxu0 0.0
    %350 = vmatprep.subr.mxu0 0.0
    %351 = vmatpush2.msra.mxu0 0.0
    %352 = vmatprep.subr.mxu0 0.0
    %353 = vmatpush2.msra.mxu0 0.0
    %354 = vmatprep.subr.mxu0 0.0
    %355 = vmatpush2.msra.mxu0 0.0
    %356 = vmatprep.subr.mxu0 0.0
    %357 = vmatpush2.msra.mxu0 0.0
    %358 = vmatprep.subr.mxu0 0.0
    %359 = vmatpush2.msra.mxu0 0.0
    %360 = vmatprep.subr.mxu0 0.0
    %361 = vmatpush2.msra.mxu0 0.0
    %362 = vmatprep.subr.mxu0 0.0
    %363 = vmatpush2.msra.mxu0 0.0
    %364 = vmatprep.subr.mxu0 0.0
    %365 = vmatpush2.msra.mxu0 0.0
    %366 = vmatprep.subr.mxu0 0.0
    %367 = vmatpush2.msra.mxu0 0.0
    %368 = vmatprep.mubr.f32.mxu0 0.0
    %369 = vmatmul.mubr.f32.gmra.mxu0 %v299
    %v370 = vpop.f32.mrf.mxu0
    %v371 = vadd.f32 0.0, %v370
    %v372 = vpop.f32.mrf.mxu0
    %373 = vmatprep.mubr.f32.mxu0 0.0
    %374 = vmatmul.mubr.f32.gmra.mxu0 %v302
    %v375 = vpop.f32.mrf.mxu0
    %v376 = vadd.f32 0.0, %v375
    %v377 = vpop.f32.mrf.mxu0
    %378 = vdwg.mxu0
    %s379 = scalar_lea.vmem %s2, 16
    %380 = vst.msk [vmem:[%s379] sm:$0xff] %vm215, %v371
    %381 = vst.msk [vmem:[%s379 + $0x8] sm:$0xff] %vm215, %v376
    %s382 = scalar_lea.vmem %s1, 8
    %v383 = vld [vmem:[%s382] sm:$0xf]
    %v385 = vsel %vm52, %v383, 0
    %387 = vmatprep.subr.mxu0 0.0
    %388 = vmatpush1.msra.mxu0 0.0
    %389 = vmatprep.subr.mxu0 0.0
    %390 = vmatpush1.msra.mxu0 0.0
    %391 = vmatprep.subr.mxu0 0.0
    %392 = vmatpush1.msra.mxu0 0.0
    %393 = vmatprep.subr.mxu0 0.0
    %394 = vmatpush1.msra.mxu0 0.0
    %395 = vmatprep.subr.mxu0 0.0
    %396 = vmatpush1.msra.mxu0 0.0
    %397 = vmatprep.subr.mxu0 0.0
    %398 = vmatpush1.msra.mxu0 0.0
    %399 = vmatprep.subr.mxu0 0.0
    %400 = vmatpush1.msra.mxu0 0.0
    %401 = vmatprep.subr.mxu0 0.0
    %402 = vmatpush1.msra.mxu0 0.0
    %403 = vmatprep.subr.mxu0 0.0
    %404 = vmatpush1.msra.mxu0 0.0
    %405 = vmatprep.subr.mxu0 0.0
    %406 = vmatpush1.msra.mxu0 0.0
    %407 = vmatprep.subr.mxu0 0.0
    %408 = vmatpush1.msra.mxu0 0.0
    %409 = vmatprep.subr.mxu0 0.0
    %410 = vmatpush1.msra.mxu0 0.0
    %411 = vmatprep.subr.mxu0 0.0
    %412 = vmatpush1.msra.mxu0 0.0
    %413 = vmatprep.subr.mxu0 0.0
    %414 = vmatpush1.msra.mxu0 0.0
    %415 = vmatprep.subr.mxu0 0.0
    %416 = vmatpush1.msra.mxu0 0.0
    %417 = vmatprep.subr.mxu0 0.0
    %418 = vmatpush1.msra.mxu0 %v385
    %419 = vmatprep.subr.mxu0 0.0
    %420 = vmatpush2.msra.mxu0 0.0
    %421 = vmatprep.subr.mxu0 0.0
    %422 = vmatpush2.msra.mxu0 0.0
    %423 = vmatprep.subr.mxu0 0.0
    %424 = vmatpush2.msra.mxu0 0.0
    %425 = vmatprep.subr.mxu0 0.0
    %426 = vmatpush2.msra.mxu0 0.0
    %427 = vmatprep.subr.mxu0 0.0
    %428 = vmatpush2.msra.mxu0 0.0
    %429 = vmatprep.subr.mxu0 0.0
    %430 = vmatpush2.msra.mxu0 0.0
    %431 = vmatprep.subr.mxu0 0.0
    %432 = vmatpush2.msra.mxu0 0.0
    %433 = vmatprep.subr.mxu0 0.0
    %434 = vmatpush2.msra.mxu0 0.0
    %435 = vmatprep.subr.mxu0 0.0
    %436 = vmatpush2.msra.mxu0 0.0
    %437 = vmatprep.subr.mxu0 0.0
    %438 = vmatpush2.msra.mxu0 0.0
    %439 = vmatprep.subr.mxu0 0.0
    %440 = vmatpush2.msra.mxu0 0.0
    %441 = vmatprep.subr.mxu0 0.0
    %442 = vmatpush2.msra.mxu0 0.0
    %443 = vmatprep.subr.mxu0 0.0
    %444 = vmatpush2.msra.mxu0 0.0
    %445 = vmatprep.subr.mxu0 0.0
    %446 = vmatpush2.msra.mxu0 0.0
    %447 = vmatprep.subr.mxu0 0.0
    %448 = vmatpush2.msra.mxu0 0.0
    %449 = vmatprep.subr.mxu0 0.0
    %450 = vmatpush2.msra.mxu0 0.0
    %451 = vmatprep.mubr.f32.mxu0 0.0
    %452 = vmatmul.mubr.f32.gmra.mxu0 %v47
    %v453 = vpop.f32.mrf.mxu0
    %v454 = vadd.f32 0.0, %v453
    %v455 = vpop.f32.mrf.mxu0
    %456 = vmatprep.mubr.f32.mxu0 0.0
    %457 = vmatmul.mubr.f32.gmra.mxu0 %v50
    %v458 = vpop.f32.mrf.mxu0
    %v459 = vadd.f32 0.0, %v458
    %v460 = vpop.f32.mrf.mxu0
    %461 = vdwg.mxu0
    %v463 = vsel %vm45, %v454, 0
    %v466 = vsel %vm45, %v459, 0
    %468 = vmatprep.subr.mxu0 0.0
    %469 = vmatpush1.msra.mxu0 0.0
    %470 = vmatprep.subr.mxu0 0.0
    %471 = vmatpush1.msra.mxu0 0.0
    %472 = vmatprep.subr.mxu0 0.0
    %473 = vmatpush1.msra.mxu0 0.0
    %474 = vmatprep.subr.mxu0 0.0
    %475 = vmatpush1.msra.mxu0 0.0
    %476 = vmatprep.subr.mxu0 0.0
    %477 = vmatpush1.msra.mxu0 0.0
    %478 = vmatprep.subr.mxu0 0.0
    %479 = vmatpush1.msra.mxu0 0.0
    %480 = vmatprep.subr.mxu0 0.0
    %481 = vmatpush1.msra.mxu0 0.0
    %482 = vmatprep.subr.mxu0 0.0
    %483 = vmatpush1.msra.mxu0 0.0
    %484 = vmatprep.subr.mxu0 0.0
    %485 = vmatpush1.msra.mxu0 0.0
    %486 = vmatprep.subr.mxu0 0.0
    %487 = vmatpush1.msra.mxu0 0.0
    %488 = vmatprep.subr.mxu0 0.0
    %489 = vmatpush1.msra.mxu0 0.0
    %490 = vmatprep.subr.mxu0 0.0
    %491 = vmatpush1.msra.mxu0 0.0
    %492 = vmatprep.subr.mxu0 0.0
    %493 = vmatpush1.msra.mxu0 0.0
    %494 = vmatprep.subr.mxu0 0.0
    %495 = vmatpush1.msra.mxu0 0.0
    %496 = vmatprep.subr.mxu0 0.0
    %497 = vmatpush1.msra.mxu0 0.0
    %498 = vmatprep.subr.mxu0 0.0
    %499 = vmatpush1.msra.mxu0 %v138
    %500 = vmatprep.subr.mxu0 0.0
    %501 = vmatpush2.msra.mxu0 0.0
    %502 = vmatprep.subr.mxu0 0.0
    %503 = vmatpush2.msra.mxu0 0.0
    %504 = vmatprep.subr.mxu0 0.0
    %505 = vmatpush2.msra.mxu0 0.0
    %506 = vmatprep.subr.mxu0 0.0
    %507 = vmatpush2.msra.mxu0 0.0
    %508 = vmatprep.subr.mxu0 0.0
    %509 = vmatpush2.msra.mxu0 0.0
    %510 = vmatprep.subr.mxu0 0.0
    %511 = vmatpush2.msra.mxu0 0.0
    %512 = vmatprep.subr.mxu0 0.0
    %513 = vmatpush2.msra.mxu0 0.0
    %514 = vmatprep.subr.mxu0 0.0
    %515 = vmatpush2.msra.mxu0 0.0
    %516 = vmatprep.subr.mxu0 0.0
    %517 = vmatpush2.msra.mxu0 0.0
    %518 = vmatprep.subr.mxu0 0.0
    %519 = vmatpush2.msra.mxu0 0.0
    %520 = vmatprep.subr.mxu0 0.0
    %521 = vmatpush2.msra.mxu0 0.0
    %522 = vmatprep.subr.mxu0 0.0
    %523 = vmatpush2.msra.mxu0 0.0
    %524 = vmatprep.subr.mxu0 0.0
    %525 = vmatpush2.msra.mxu0 0.0
    %526 = vmatprep.subr.mxu0 0.0
    %527 = vmatpush2.msra.mxu0 0.0
    %528 = vmatprep.subr.mxu0 0.0
    %529 = vmatpush2.msra.mxu0 0.0
    %530 = vmatprep.subr.mxu0 0.0
    %531 = vmatpush2.msra.mxu0 0.0
    %532 = vmatprep.mubr.f32.mxu0 0.0
    %533 = vmatmul.mubr.f32.gmra.mxu0 %v463
    %v534 = vpop.f32.mrf.mxu0
    %v535 = vadd.f32 0.0, %v534
    %v536 = vpop.f32.mrf.mxu0
    %537 = vmatprep.mubr.f32.mxu0 0.0
    %538 = vmatmul.mubr.f32.gmra.mxu0 %v466
    %v539 = vpop.f32.mrf.mxu0
    %v540 = vadd.f32 0.0, %v539
    %v541 = vpop.f32.mrf.mxu0
    %542 = vdwg.mxu0
    %s543 = scalar_lea.vmem %s2, 32
    %544 = vst.msk [vmem:[%s543] sm:$0xff] %vm215, %v535
    %545 = vst.msk [vmem:[%s543 + $0x8] sm:$0xff] %vm215, %v540
    // Predicated region
    $region14: #{random_patch_prompter.2} parent=1 // pred_check
      _
    $region15: #{random_patch_prompter.2} parent=1 // pred_check_branch
      %547 = sbr.rel (0) target = $region17
    $region16: #{random_patch_prompter.2} parent=1 // pred_region
      _
    $region17: #{random_patch_prompter.2} parent=1 // pred_fallthru
      _
    // Predicated region
    $region18: #{random_patch_prompter.2} parent=1 // pred_check
      _
    $region19: #{random_patch_prompter.2} parent=1 // pred_check_branch
      %549 = sbr.rel (0) target = $region21
    $region20: #{random_patch_prompter.2} parent=1 // pred_region
      _
    $region21: #{random_patch_prompter.2} parent=1 // pred_fallthru
      _
    %550 = vsyncpa [#allocation3], 1

// kernel: random_patch_prompter.3
$region0: #{random_patch_prompter.3}
  #allocation0 [shape = 'u32[]', space=smem, size = 0x4, offset = 0x4, fixed_abs, tag = 'smem constant byte address 0x4 - core index']
  #allocation1 [shape = 'u32[144,128]{1,0:T(1,128)}', space=vmem, size = 0x12000, scoped, tag = 'internal scratch']
  %s0 = inlined_call_operand.vmem [shape: f32[2,768], index: 0, kind: input, shape index: {}]
  %s1 = inlined_call_operand.vmem [shape: f32[1,768], index: 1, kind: input, shape index: {}]
  %s2 = inlined_call_operand.vmem [shape: f32[2,768], index: 2, kind: output, shape index: {}]
  %s3 = sld [smem:[#allocation0]]
  $region41: #{random_patch_prompter.3} parent=0
    _
  %s5 = ssub.s32 1, %s3
  %s6 = scalar_select 0, %s5, %s3
  loop: start=0, step=1, limit=4
  $region2: #{random_patch_prompter.3} parent=0 // loop_pre_header
    _
  $region3: #{random_patch_prompter.3} parent=0 // loop_header
    %s8 = sphi 0, %s12
    %p9 = scmp.ge.s32.totalorder %s8, 4
    %s15 = sphi 0, %s27
    %s16 = sphi 0, %s23
    %s17 = sphi 0, %s15
    %s18 = sphi 0, %s16
    %s19 = sphi 0, %s17
    %s20 = sphi 0, %s18
    %s32 = sphi 0, %s34
    %s35 = sphi 0, %s32
    %s36 = sphi 0, %s35
    %s52 = sphi 0, %s36
    %s58 = sphi 0, %s60
    %s61 = sphi 0, %s58
    %s62 = sphi 0, %s61
    %s78 = sphi 0, %s62
    %s86 = sphi 0, %s88
    %s89 = sphi 0, %s86
    %s90 = sphi 0, %s89
    %s106 = sphi 0, %s90
  $region4: #{random_patch_prompter.3} parent=0 // loop_header_branch
    %11 = sbr.rel (%p9) target = $region8
  $region5: #{random_patch_prompter.3} parent=0 // loop_body
    %s13 = ssub.s32 %s8, 1
    %s14 = ssub.s32 %s8, 2
    %s21 = sadd.s32 1, %s16
    %p22 = scmp.ge.s32.totalorder %s21, 2
    %s23 = scalar_select %p22, 0, %s21
    %s24 = sadd.s32 1, %s15
    %s25 = scalar_select %p22, %s24, %s15
    %p26 = scmp.ge.s32.totalorder %s25, 1
    %s27 = scalar_select %p26, 0, %s25
    %s28 = ssub.s32 %s15, %s27
    %s29 = ssub.s32 %s16, %s23
    %s30 = sor.u32 %s28, %s29
    %p31 = scmp.eq.s32.totalorder %s30, 0
    %s33 = sadd.s32 %s32, 1
    %s34 = scalar_select %p31, %s32, %s33
    %p37 = pneg %p31
    %p38 = scmp.eq.s32.totalorder %s8, 1
    %p39 = por %p37, %p38
    %p40 = scmp.ne.s32.totalorder %s32, %s35
    %p41 = scmp.eq.s32.totalorder %s8, 0
    %p42 = por %p40, %p41
    %p43 = scmp.ne.s32.totalorder %s32, %s35
    %p44 = scmp.eq.s32.totalorder %s13, 1
    %p45 = por %p43, %p44
    %p46 = scmp.ne.s32.totalorder %s35, %s36
    %p47 = scmp.eq.s32.totalorder %s13, 0
    %p48 = por %p46, %p47
    %p49 = scmp.ne.s32.totalorder %s35, %s36
    %p50 = scmp.eq.s32.totalorder %s14, 1
    %p51 = por %p49, %p50
    %p53 = scmp.ne.s32.totalorder %s36, %s52
    %p54 = scmp.eq.s32.totalorder %s14, 0
    %p55 = por %p53, %p54
    %s56 = ssub.s32 %s16, %s23
    %p57 = scmp.eq.s32.totalorder %s56, 0
    %s59 = sadd.s32 %s58, 1
    %s60 = scalar_select %p57, %s58, %s59
    %p63 = pneg %p57
    %p64 = scmp.eq.s32.totalorder %s8, 1
    %p65 = por %p63, %p64
    %p66 = scmp.ne.s32.totalorder %s58, %s61
    %p67 = scmp.eq.s32.totalorder %s8, 0
    %p68 = por %p66, %p67
    %p69 = scmp.ne.s32.totalorder %s58, %s61
    %p70 = scmp.eq.s32.totalorder %s13, 1
    %p71 = por %p69, %p70
    %p72 = scmp.ne.s32.totalorder %s61, %s62
    %p73 = scmp.eq.s32.totalorder %s13, 0
    %p74 = por %p72, %p73
    %p75 = scmp.ne.s32.totalorder %s61, %s62
    %p76 = scmp.eq.s32.totalorder %s14, 1
    %p77 = por %p75, %p76
    %p79 = scmp.ne.s32.totalorder %s62, %s78
    %p80 = scmp.eq.s32.totalorder %s14, 0
    %p81 = por %p79, %p80
    %s82 = ssub.s32 %s15, %s27
    %s83 = ssub.s32 %s16, %s23
    %s84 = sor.u32 %s82, %s83
    %p85 = scmp.eq.s32.totalorder %s84, 0
    %s87 = sadd.s32 %s86, 1
    %s88 = scalar_select %p85, %s86, %s87
    %p91 = pneg %p85
    %p92 = scmp.eq.s32.totalorder %s8, 1
    %p93 = por %p91, %p92
    %p94 = scmp.ne.s32.totalorder %s86, %s89
    %p95 = scmp.eq.s32.totalorder %s8, 0
    %p96 = por %p94, %p95
    %p97 = scmp.ne.s32.totalorder %s86, %s89
    %p98 = scmp.eq.s32.totalorder %s13, 1
    %p99 = por %p97, %p98
    %p100 = scmp.ne.s32.totalorder %s89, %s90
    %p101 = scmp.eq.s32.totalorder %s13, 0
    %p102 = por %p100, %p101
    %p103 = scmp.ne.s32.totalorder %s89, %s90
    %p104 = scmp.eq.s32.totalorder %s14, 1
    %p105 = por %p103, %p104
    %p107 = scmp.ne.s32.totalorder %s90, %s106
    %p108 = scmp.eq.s32.totalorder %s14, 0
    %p109 = por %p107, %p108
    %p110 = scmp.le.s32.totalorder 1, %s8
    %p111 = scmp.lt.s32.totalorder %s8, 3
    %p112 = pnand %p110, %p111
    %p113 = pneg %p112
    // Predicated region
    $region9: #{random_patch_prompter.3} parent=5 // pred_check
      _
    $region10: #{random_patch_prompter.3} parent=5 // pred_check_branch
      %115 = sbr.rel (%p112) target = $region12
    $region11: #{random_patch_prompter.3} parent=5 // pred_region
      %s116 = ssub.s32 %s8, 1
    $region12: #{random_patch_prompter.3} parent=5 // pred_fallthru
      _
    %p117 = scmp.lt.s32.totalorder %s8, 2
    // Predicated region
    $region13: #{random_patch_prompter.3} parent=5 // pred_check
      %p118 = pneg %p117
    $region14: #{random_patch_prompter.3} parent=5 // pred_check_branch
      %120 = sbr.rel (%p118) target = $region16
    $region15: #{random_patch_prompter.3} parent=5 // pred_region
      // Predicated region
      $region17: #{random_patch_prompter.3} parent=15 // pred_check
        %p121 = pneg %p42
      $region18: #{random_patch_prompter.3} parent=15 // pred_check_branch
        %123 = sbr.rel (%p121) target = $region20
      $region19: #{random_patch_prompter.3} parent=15 // pred_region
        %s124 = smul.u32 3, %s16
        %p125 = scmp.lt.s32.totalorder %s15, 0
        %s126 = scalar_select %p125, %s15, 0
        %p127 = scmp.lt.s32.totalorder %s124, 5
        %s128 = scalar_select %p127, %s124, 5
        %s129 = smul.addr %s126, 6
        %s130 = sadd.s32 %s128, %s129
        %s131 = smul.addr %s130, 2
        %s132 = scalar_lea.vmem %s0, %s131
        %s133 = smul.u32 3, %s16
      $region20: #{random_patch_prompter.3} parent=15 // pred_fallthru
        _
      // Predicated region
      $region21: #{random_patch_prompter.3} parent=15 // pred_check
        %p134 = pneg %p68
      $region22: #{random_patch_prompter.3} parent=15 // pred_check_branch
        %136 = sbr.rel (%p134) target = $region24
      $region23: #{random_patch_prompter.3} parent=15 // pred_region
        %s137 = smul.u32 3, %s16
        %p138 = scmp.lt.s32.totalorder %s137, 5
        %s139 = scalar_select %p138, %s137, 5
        %s140 = scalar_lea.vmem %s1, %s139
        %s141 = smul.u32 3, %s16
      $region24: #{random_patch_prompter.3} parent=15 // pred_fallthru
        _
    $region16: #{random_patch_prompter.3} parent=5 // pred_fallthru
      _
    %p142 = scmp.le.s32.totalorder 1, %s8
    %p143 = scmp.lt.s32.totalorder %s8, 3
    %p144 = pnand %p142, %p143
    %p145 = pneg %p144
    // Predicated region
    $region25: #{random_patch_prompter.3} parent=5 // pred_check
      _
    $region26: #{random_patch_prompter.3} parent=5 // pred_check_branch
      %147 = sbr.rel (%p144) target = $region28
    $region27: #{random_patch_prompter.3} parent=5 // pred_region
      %s148 = ssub.s32 %s8, 1
      %s149 = smul.u32 3, %s18
      %p150 = scmp.lt.s32.totalorder %s17, 0
      %s151 = scalar_select %p150, %s17, 0
      %p152 = scmp.lt.s32.totalorder %s149, 5
      %s153 = scalar_select %p152, %s149, 5
      %s154 = smul.addr %s151, 6
      %s155 = sadd.s32 %s153, %s154
      %s156 = smul.addr %s155, 2
      %s157 = scalar_lea.vmem %s0, %s156
      %p158 = pneg %p48
      %p159 = pneg %p45
      %s160 = smul.u32 3, %s18
      %p161 = scmp.lt.s32.totalorder %s160, 5
      %s162 = scalar_select %p161, %s160, 5
      %s163 = scalar_lea.vmem %s1, %s162
      %p164 = pneg %p74
      %p165 = pneg %p71
      %p166 = pneg %p102
      %p167 = pneg %p99
      %s168 = smul.u32 3, %s18
      %p169 = scmp.lt.s32.totalorder %s17, 0
      %s170 = scalar_select %p169, %s17, 0
      %p171 = scmp.lt.s32.totalorder %s168, 5
      %s172 = scalar_select %p171, %s168, 5
      %s173 = smul.addr %s170, 6
      %s174 = sadd.s32 %s172, %s173
      %s175 = smul.addr %s174, 2
      %s176 = scalar_lea.vmem %s2, %s175
      %s177 = smul.u32 3, %s18
      %p178 = scmp.lt.s32.totalorder %s17, 0
      %s179 = scalar_select %p178, %s17, 0
      %p180 = scmp.lt.s32.totalorder %s177, 5
      %s181 = scalar_select %p180, %s177, 5
      %s182 = smul.addr %s179, 6
      %s183 = sadd.s32 %s181, %s182
      %s184 = smul.addr %s183, 2
      %s185 = scalar_lea.vmem %s0, %s184
      %s186 = smul.u32 3, %s18
      %s187 = smul.u32 3, %s18
      %p188 = scmp.lt.s32.totalorder %s187, 5
      %s189 = scalar_select %p188, %s187, 5
      %s190 = scalar_lea.vmem %s1, %s189
      %s191 = smul.u32 3, %s18
      %s192 = smul.u32 3, %s18
      %p193 = scmp.lt.s32.totalorder %s17, 0
      %s194 = scalar_select %p193, %s17, 0
      %p195 = scmp.lt.s32.totalorder %s192, 5
      %s196 = scalar_select %p195, %s192, 5
      %s197 = smul.addr %s194, 6
      %s198 = sadd.s32 %s196, %s197
      %s199 = smul.addr %s198, 2
      %s200 = scalar_lea.vmem %s2, %s199
      %s201 = smul.u32 3, %s18
      %v202 = vld [vmem:[%s185] sm:$0x3f]
      %v203 = vld [vmem:[%s190] sm:$0x7]
      %v205 = vlaneseq
      %v206 = vshrl.u32 %v205, 7
      %v207 = vsub.s32 0, %v206
      %v208 = vrot.slane %v203, %v207
      %v209 = vlaneseq
      %v210 = vshrl.u32 %v209, 7
      %v211 = vsub.s32 1, %v210
      %v212 = vrot.slane %v203, %v211
      %v213 = vlaneseq
      %v214 = vshrl.u32 %v213, 7
      %v215 = vsub.s32 2, %v214
      %v216 = vrot.slane %v203, %v215
      %v217 = vcombine.low %v208, %v212
      %v219 = vunpack.c.l.s4 1983009808
      %v220 = vunpack.c.0.s8 %v219
      %v221 = vlaneseq
      %v222 = vshrl.u32 %v221, 7
      %v223 = vsub.s32 %v220, %v222
      %v224 = vrot.slane %v217, %v223
      %v226 = vunpack.c.l.s4 1983009808
      %v227 = vunpack.c.0.s8 %v226
      %v228 = vlaneseq
      %v229 = vshrl.u32 %v228, 7
      %v230 = vsub.s32 %v227, %v229
      %v231 = vrot.slane %v216, %v230
      %v232 = vcombine.low %v224, %v231
      %v234 = vadd.f32 %v202, %v232
      %235 = vst [vmem:[%s200] sm:$0x3f] %v234
      %s236 = smul.u32 3, %s18
      %p237 = scmp.lt.s32.totalorder %s17, 0
      %s238 = scalar_select %p237, %s17, 0
      %p239 = scmp.lt.s32.totalorder %s236, 5
      %s240 = scalar_select %p239, %s236, 5
      %s241 = smul.addr %s238, 6
      %s242 = sadd.s32 %s240, %s241
      %s243 = smul.addr %s242, 2
      %s244 = scalar_lea.vmem %s2, %s243
      // Predicated region
      $region29: #{random_patch_prompter.3} parent=27 // pred_check
        %p245 = pneg %p99
      $region30: #{random_patch_prompter.3} parent=27 // pred_check_branch
        %247 = sbr.rel (%p245) target = $region32
      $region31: #{random_patch_prompter.3} parent=27 // pred_region
        %s248 = smul.u32 3, %s18
      $region32: #{random_patch_prompter.3} parent=27 // pred_fallthru
        _
    $region28: #{random_patch_prompter.3} parent=5 // pred_fallthru
      _
    %p249 = scmp.le.s32.totalorder 2, %s8
    // Predicated region
    $region33: #{random_patch_prompter.3} parent=5 // pred_check
      %p250 = pneg %p249
    $region34: #{random_patch_prompter.3} parent=5 // pred_check_branch
      %252 = sbr.rel (%p250) target = $region36
    $region35: #{random_patch_prompter.3} parent=5 // pred_region
      %s253 = ssub.s32 %s8, 2
      // Predicated region
      $region37: #{random_patch_prompter.3} parent=35 // pred_check
        %p254 = pneg %p105
      $region38: #{random_patch_prompter.3} parent=35 // pred_check_branch
        %256 = sbr.rel (%p254) target = $region40
      $region39: #{random_patch_prompter.3} parent=35 // pred_region
        %s257 = smul.u32 3, %s20
        %p258 = scmp.lt.s32.totalorder %s19, 0
        %s259 = scalar_select %p258, %s19, 0
        %p260 = scmp.lt.s32.totalorder %s257, 5
        %s261 = scalar_select %p260, %s257, 5
        %s262 = smul.addr %s259, 6
        %s263 = sadd.s32 %s261, %s262
        %s264 = smul.addr %s263, 2
        %s265 = scalar_lea.vmem %s2, %s264
      $region40: #{random_patch_prompter.3} parent=35 // pred_fallthru
        _
    $region36: #{random_patch_prompter.3} parent=5 // pred_fallthru
      _
  $region6: #{random_patch_prompter.3} parent=0 // loop_footer
    %s12 = sadd.s32 1, %s8
  $region7: #{random_patch_prompter.3} parent=0 // loop_footer_branch
    %7 = sbr.rel target = $region3
  $region8: #{random_patch_prompter.3} parent=0 // loop_exit
    _

</llo_original>
